<compile_context>
chip_gen: v6e
topology: v6e:2x2x1
jax: 0.10.0
libtpu: 0.0.40
codegen_flags: <defaults>
</compile_context>

<pallas_src>
import functools
import math

import jax
import jax.numpy as jnp
from jax import lax
from jax.experimental import pallas as pl
from jax.experimental.pallas import tpu as pltpu


MASK_VALUE = -1e30  # large finite negative; safer than -inf for softmax


def _round_up(n, m):
    return ((n + m - 1) // m) * m


def _pick_tile(n, preferred):
    """Largest power-of-two tile <= preferred that divides n, else n itself."""
    if n <= preferred:
        return n
    t = preferred
    while t >= 8:
        if n % t == 0:
            return t
        t //= 2
    return n


# ---------------------------------------------------------------------------
# Kernel 1: fused QKV projection  (B*T, d_in) @ [Wq|Wk|Wv] -> (B*T, 3*d_out_pad)
# ---------------------------------------------------------------------------
def _qkv_proj_kernel(x_ref, w_ref, o_ref):
    o_ref[...] = jnp.dot(
        x_ref[...], w_ref[...], preferred_element_type=jnp.float32
    ).astype(o_ref.dtype)


# ---------------------------------------------------------------------------
# Kernel 2: flash attention (causal) + fused output projection
# ---------------------------------------------------------------------------
def _flash_attn_kernel(q_ref, k_ref, v_ref, wo_ref, bo_ref, o_ref,
                       m_ref, l_ref, acc_ref,
                       *, num_heads, head_dim, sm_scale, mxu_dtype):
    qi = pl.program_id(1)
    kv = pl.program_id(2)
    tq = q_ref.shape[1]
    tkv = k_ref.shape[1]

    @pl.when(kv == 0)
    def _init():
        m_ref[...] = jnp.full(m_ref.shape, MASK_VALUE, m_ref.dtype)
        l_ref[...] = jnp.zeros(l_ref.shape, l_ref.dtype)
        acc_ref[...] = jnp.zeros(acc_ref.shape, acc_ref.dtype)

    def attend(masked):
        if masked:
            # Diagonal tile (qi == kv, tq == tkv): local iota == global offset.
            row = lax.broadcasted_iota(jnp.int32, (tq, tkv), 0)
            col = lax.broadcasted_iota(jnp.int32, (tq, tkv), 1)
            causal = col > row
        for h in range(num_heads):  # static unroll; lane-contiguous slices
            sl = slice(h * head_dim, (h + 1) * head_dim)
            q_h = q_ref[0, :, sl]                       # (tq, hd)
            k_h = k_ref[0, :, sl]                       # (tkv, hd)
            v_h = v_ref[0, :, sl]                       # (tkv, hd)
            # scores (tq, tkv): contract over head_dim, accumulate in f32
            s = lax.dot_general(q_h, k_h, (((1,), (1,)), ((), ())),
                                preferred_element_type=jnp.float32)
            s = s * sm_scale                            # f32 VPU
            if masked:
                s = jnp.where(causal, MASK_VALUE, s)
            m_prev = m_ref[h]                           # (tq, 1)
            m_new = jnp.maximum(m_prev, jnp.max(s, axis=-1, keepdims=True))
            alpha = jnp.exp(m_prev - m_new)             # f32 softmax math (EUP)
            p = jnp.exp(s - m_new)                      # (tq, tkv) f32
            l_ref[h] = alpha * l_ref[h] + jnp.sum(p, axis=-1, keepdims=True)
            pv = jnp.dot(p.astype(mxu_dtype), v_h,
                         preferred_element_type=jnp.float32)  # (tq, hd)
            acc_ref[:, sl] = alpha * acc_ref[:, sl] + pv
            m_ref[h] = m_new

    @pl.when(kv < qi)        # strictly below the diagonal: no mask needed
    def _below():
        attend(masked=False)

    @pl.when(kv == qi)       # diagonal tile: apply the causal mask
    def _diag():
        attend(masked=True)

    # kv > qi tiles are fully masked -> skipped entirely (no compute), and the
    # index_map clamp below means no K/V DMA is issued for them either.

    @pl.when(kv == qi)       # last kv tile that contributes to this q tile
    def _finalize():
        # normalize each head's context by its softmax denominator (deferred)
        for h in range(num_heads):
            sl = slice(h * head_dim, (h + 1) * head_dim)
            inv_l = pl.reciprocal(l_ref[h], approx=True)        # (tq, 1)
            acc_ref[:, sl] = acc_ref[:, sl] * inv_l
        ctx = acc_ref[...].astype(mxu_dtype)                    # (tq, d_out_pad)
        out = jnp.dot(ctx, wo_ref[...], preferred_element_type=jnp.float32)
        out = out + bo_ref[...]                                 # (1, d_out_pad)
        o_ref[0] = out.astype(o_ref.dtype)


# ---------------------------------------------------------------------------
# Wrapper
# ---------------------------------------------------------------------------
def multi_head_attention(x, wq, wk, wv, wo, bo, *, num_heads, dropout_p=0.0,
                         mxu_dtype=jnp.bfloat16, block_size=128,
                         vmem_limit_bytes=48 * 1024 * 1024):
    """Causal multi-head attention forward (matches the PyTorch module).

    x: (B, T, d_in); wq/wk/wv: (d_in, d_out) (nn.Linear weights pre-transposed,
    no bias); wo: (d_out, d_out); bo: (d_out,).
    """
    # TODO(synk): training-mode dropout on attention weights not implemented.
    assert dropout_p == 0.0, "only inference mode (dropout == 0) is supported"

    B, T, d_in = x.shape
    d_out = wq.shape[1]
    assert d_out % num_heads == 0, "d_out must be divisible by num_heads"
    head_dim = d_out // num_heads

    # --- lane-dense padding of the model dimension (multiple of 128) ---
    d_out_pad = _round_up(d_out, 128)
    pad_c = d_out_pad - d_out

    def pad_cols(w):
        return jnp.pad(w, ((0, 0), (0, pad_c)))

    w_qkv = jnp.concatenate(
        [pad_cols(wq), pad_cols(wk), pad_cols(wv)], axis=1).astype(mxu_dtype)
    wo_p = jnp.pad(wo, ((0, pad_c), (0, pad_c))).astype(mxu_dtype)
    bo_p = jnp.pad(bo.reshape(1, d_out), ((0, 0), (0, pad_c))).astype(jnp.float32)

    # --- kernel 1: fused QKV projection over flattened tokens ---
    M = B * T
    x2d = x.reshape(M, d_in).astype(mxu_dtype)
    tm = _pick_tile(M, 256)
    qkv = pl.pallas_call(
        _qkv_proj_kernel,
        out_shape=jax.ShapeDtypeStruct((M, 3 * d_out_pad), mxu_dtype),
        grid_spec=pltpu.PrefetchScalarGridSpec(
            num_scalar_prefetch=0,
            grid=(M // tm,),
            in_specs=[
                pl.BlockSpec((tm, d_in), lambda i: (i, 0)),
                pl.BlockSpec((d_in, 3 * d_out_pad), lambda i: (0, 0)),
            ],
            out_specs=pl.BlockSpec((tm, 3 * d_out_pad), lambda i: (i, 0)),
        ),
        compiler_params=pltpu.CompilerParams(
            dimension_semantics=("parallel",),
            vmem_limit_bytes=vmem_limit_bytes),
    )(x2d, w_qkv)
    qkv = qkv.reshape(B, T, 3 * d_out_pad)

    # --- kernel 2: flash attention + output projection ---
    tile = _pick_tile(T, block_size)      # tq == tkv (diagonal-tile masking)
    assert T % tile == 0
    nq = T // tile

    kernel = functools.partial(
        _flash_attn_kernel, num_heads=num_heads, head_dim=head_dim,
        sm_scale=1.0 / math.sqrt(head_dim), mxu_dtype=mxu_dtype)

    # Clamp the kv block index to the diagonal for kv > qi: those tiles are
    # fully masked (skipped in-kernel), and an unchanged block index means
    # Pallas does not issue any DMA for them.
    def kv_block_map(block_id):
        def index_map(b, qi, kv):
            return (b, jnp.minimum(kv, qi), block_id)
        return index_map

    out_pad = pl.pallas_call(
        kernel,
        out_shape=jax.ShapeDtypeStruct((B, T, d_out_pad), x.dtype),
        grid_spec=pltpu.PrefetchScalarGridSpec(
            num_scalar_prefetch=0,
            grid=(B, nq, nq),
            in_specs=[
                pl.BlockSpec((1, tile, d_out_pad), lambda b, qi, kv: (b, qi, 0)),  # Q
                pl.BlockSpec((1, tile, d_out_pad), kv_block_map(1)),               # K
                pl.BlockSpec((1, tile, d_out_pad), kv_block_map(2)),               # V
                # constant weights: block index never changes -> single DMA
                pl.BlockSpec((d_out_pad, d_out_pad), lambda b, qi, kv: (0, 0)),    # Wo
                pl.BlockSpec((1, d_out_pad), lambda b, qi, kv: (0, 0)),            # bias
            ],
            out_specs=pl.BlockSpec((1, tile, d_out_pad),
                                   lambda b, qi, kv: (b, qi, 0)),
            scratch_shapes=[
                pltpu.VMEM((num_heads, tile, 1), jnp.float32),   # running max
                pltpu.VMEM((num_heads, tile, 1), jnp.float32),   # running sum
                pltpu.VMEM((tile, d_out_pad), jnp.float32),      # context acc
            ],
        ),
        compiler_params=pltpu.CompilerParams(
            dimension_semantics=("parallel", "parallel", "arbitrary"),
            vmem_limit_bytes=vmem_limit_bytes),
    )(qkv, qkv, qkv, wo_p, bo_p)

    return out_pad[:, :, :d_out]


# ---------------------------------------------------------------------------
# Pure-JAX reference (mirrors the PyTorch module, f32)
# ---------------------------------------------------------------------------
def reference_mha(x, wq, wk, wv, wo, bo, *, num_heads):
    B, T, d_in = x.shape
    d_out = wq.shape[1]
    hd = d_out // num_heads
    q = (x @ wq).reshape(B, T, num_heads, hd).transpose(0, 2, 1, 3)
    k = (x @ wk).reshape(B, T, num_heads, hd).transpose(0, 2, 1, 3)
    v = (x @ wv).reshape(B, T, num_heads, hd).transpose(0, 2, 1, 3)
    s = jnp.einsum('bhtd,bhsd->bhts', q, k)
    mask = jnp.triu(jnp.ones((T, T), dtype=bool), k=1)
    s = jnp.where(mask[None, None], -jnp.inf, s)
    w = jax.nn.softmax(s / math.sqrt(hd), axis=-1)
    ctx = jnp.einsum('bhts,bhsd->bhtd', w, v).transpose(0, 2, 1, 3)
    ctx = ctx.reshape(B, T, d_out)
    return ctx @ wo + bo


if __name__ == "__main__":
    B, T, d_in, d_out, num_heads = 2, 8, 32, 32, 4
    key = jax.random.PRNGKey(0)
    kx, kq, kk, kv_, ko, kb = jax.random.split(key, 6)

    x = jax.random.normal(kx, (B, T, d_in), jnp.float32)
    wq = jax.random.normal(kq, (d_in, d_out), jnp.float32) / math.sqrt(d_in)
    wk = jax.random.normal(kk, (d_in, d_out), jnp.float32) / math.sqrt(d_in)
    wv = jax.random.normal(kv_, (d_in, d_out), jnp.float32) / math.sqrt(d_in)
    wo = jax.random.normal(ko, (d_out, d_out), jnp.float32) / math.sqrt(d_out)
    bo = jax.random.normal(kb, (d_out,), jnp.float32) * 0.02

    ref = reference_mha(x, wq, wk, wv, wo, bo, num_heads=num_heads)

    # Main run: bf16 MXU operands with f32 accumulation (production config).
    out = multi_head_attention(x, wq, wk, wv, wo, bo, num_heads=num_heads,
                               mxu_dtype=jnp.bfloat16)
    out = jax.block_until_ready(out)
    assert out.shape == (B, T, d_out)
    assert jnp.allclose(out, ref, atol=1e-1, rtol=1e-1), "bf16 path mismatch"

    # f32 path: tight numerical check of the kernel logic
    # (tolerance covers the approx reciprocal used for softmax normalization).
    out32 = multi_head_attention(x, wq, wk, wv, wo, bo, num_heads=num_heads,
                                 mxu_dtype=jnp.float32)
    out32 = jax.block_until_ready(out32)
    err32 = float(jnp.max(jnp.abs(out32 - ref)))
    assert err32 < 2e-2, f"f32 path mismatch (max abs err {err32})"

    # Multi-tile config: exercises q/kv tiling, causal tile skipping, the
    # clamped (DMA-free) above-diagonal kv index map, and the diagonal-only
    # mask (T=32 with 8-token tiles -> 4x4 kv grid per batch).
    T2 = 32
    x2 = jax.random.normal(jax.random.PRNGKey(1), (B, T2, d_in), jnp.float32)
    ref2 = reference_mha(x2, wq, wk, wv, wo, bo, num_heads=num_heads)
    out2 = multi_head_attention(x2, wq, wk, wv, wo, bo, num_heads=num_heads,
                                mxu_dtype=jnp.float32, block_size=8)
    out2 = jax.block_until_ready(out2)
    err2 = float(jnp.max(jnp.abs(out2 - ref2)))
    assert err2 < 2e-2, f"tiled f32 path mismatch (max abs err {err2})"

    print("KERNEL_OK")
</pallas_src>

<mosaic_0001>
module attributes {stable_mosaic.version = 11 : i64} {
  func.func @_qkv_proj_kernel(%arg0: i32, %arg1: memref<16x32xbf16, #tpu.memory_space<vmem>>, %arg2: memref<32x384xbf16, #tpu.memory_space<vmem>>, %arg3: memref<16x384xbf16, #tpu.memory_space<vmem>>) attributes {dimension_semantics = [#tpu.dimension_semantics<parallel>], iteration_bounds = array<i64: 1>, scalar_prefetch = 0 : i64, scratch_operands = 0 : i64, tpu.core_type = #tpu.core_type<tc>, window_params = [{transform_indices = @transform_0, window_bounds = array<i64: 16, 32>}, {pipeline_mode = #tpu.pipeline_mode<synchronous>, transform_indices = @transform_1, window_bounds = array<i64: 32, 384>}, {transform_indices = @transform_2, window_bounds = array<i64: 16, 384>}]} {
    %c0 = arith.constant 0 : index
    %c0_0 = arith.constant 0 : index
    %0 = vector.load %arg1[%c0, %c0_0] : memref<16x32xbf16, #tpu.memory_space<vmem>>, vector<16x32xbf16>
    %c0_1 = arith.constant 0 : index
    %c0_2 = arith.constant 0 : index
    %1 = vector.load %arg2[%c0_1, %c0_2] : memref<32x384xbf16, #tpu.memory_space<vmem>>, vector<32x384xbf16>
    %cst = arith.constant dense<0.000000e+00> : vector<16x384xf32>
    %2 = tpu.matmul %0, %1, %cst {dimension_numbers = #tpu.dot_dimension_numbers<[1], [0], [0], [1], [0, 0, 1, 1], [], []>} : vector<16x32xbf16>, vector<32x384xbf16>, vector<16x384xf32> -> vector<16x384xf32>
    %3 = arith.truncf %2 : vector<16x384xf32> to vector<16x384xbf16>
    %c0_3 = arith.constant 0 : index
    %c0_4 = arith.constant 0 : index
    %4 = vector.load %arg3[%c0_3, %c0_4] : memref<16x384xbf16, #tpu.memory_space<vmem>>, vector<16x384xbf16>
    tpu.vector_store %arg3[%c0_3, %c0_4], %3 {strides = array<i32>} : memref<16x384xbf16, #tpu.memory_space<vmem>>, vector<16x384xbf16>,
    return
  }
  func.func @transform_0(%arg0: i32) -> (i32, i32) {
    %c0_i32 = arith.constant 0 : i32
    %c0_i32_0 = arith.constant 0 : i32
    return %arg0, %c0_i32 : i32, i32
  }
  func.func @transform_1(%arg0: i32) -> (i32, i32) {
    %c0_i32 = arith.constant 0 : i32
    %c0_i32_0 = arith.constant 0 : i32
    %c0_i32_1 = arith.constant 0 : i32
    return %c0_i32, %c0_i32_0 : i32, i32
  }
  func.func @transform_2(%arg0: i32) -> (i32, i32) {
    %c0_i32 = arith.constant 0 : i32
    %c0_i32_0 = arith.constant 0 : i32
    return %arg0, %c0_i32 : i32, i32
  }
}

</mosaic_0001>

<llo_original>
// kernel: tpu_custom_call.1
$region0: #{tpu_custom_call.1}
  #allocation0 [shape = 'u32[]', space=smem, size = 0x4, offset = 0x4, fixed_abs, tag = 'smem constant byte address 0x4 - core index']
  #allocation1 [shape = 'u32[144,128]{1,0:T(1,128)}', space=vmem, size = 0x12000, scoped, tag = 'internal scratch']
  %s0 = inlined_call_operand.hbm [shape: bf16[16,32], index: 0, kind: input, shape index: {}]
  %s1 = inlined_call_operand.hbm [shape: bf16[32,384], index: 1, kind: input, shape index: {}]
  %s2 = inlined_call_operand.hbm [shape: bf16[16,384], index: 2, kind: output, shape index: {}]
  %s3 = sld [smem:[#allocation0]]
  $region26: #{tpu_custom_call.1} parent=0
    _
  %s5 = ssub.s32 1, %s3
  %s6 = scalar_select 0, %s5, %s3
  $region1: #{tpu_custom_call.1} parent=0
    #allocation2 [shape = 'u8[4096]{0}', space=vmem, size = 0x1000, scoped, tag = 'input window, operand 0, single buffered']
    #allocation3 [shape = 's32[1]{0}', space=sflag, size = 0x4, scoped, tag = 'scoped memory for tpu_custom_call.1']
    #allocation4 [shape = 's32[1]{0}', space=sflag, size = 0x4, scoped, tag = 'scoped memory for tpu_custom_call.1']
    #allocation5 [shape = 'u8[24576]{0}', space=vmem, size = 0x6000, scoped, tag = 'input window, operand 1, single buffered']
    #allocation6 [shape = 's32[1]{0}', space=sflag, size = 0x4, scoped, tag = 'scoped memory for tpu_custom_call.1']
    #allocation7 [shape = 'u8[12288]{0}', space=vmem, size = 0x3000, scoped, tag = 'output window, operand 0, single buffered']
    %7 = vsyncpa [#allocation3], 0
    %8 = vsyncpa [#allocation6], 0
    %9 = vsyncpa [#allocation4], 0
    // Predicated region
    $region2: #{tpu_custom_call.1} parent=1 // pred_check
      _
    $region3: #{tpu_custom_call.1} parent=1 // pred_check_branch
      %11 = sbr.rel (0) target = $region5
    $region4: #{tpu_custom_call.1} parent=1 // pred_region
      %s13 = ssub.s32 128, 128
      %14 = vsyncadd [#allocation3], %s13
      %s15 = sshll.u32 [#allocation2], 4
      %s16 = int_to_ptr.vmem [resolvable:$true] %s15
      %21 = dma.hbm_to_vmem [thread:$0]  %s0, 128, %s16, [#allocation3], 64, 64, 4
    $region5: #{tpu_custom_call.1} parent=1 // pred_fallthru
      _
    // Predicated region
    $region6: #{tpu_custom_call.1} parent=1 // pred_check
      _
    $region7: #{tpu_custom_call.1} parent=1 // pred_check_branch
      %23 = sbr.rel (0) target = $region9
    $region8: #{tpu_custom_call.1} parent=1 // pred_region
      %s25 = ssub.s32 768, 768
      %26 = vsyncadd [#allocation6], %s25
      %s27 = sshll.u32 [#allocation5], 4
      %s28 = int_to_ptr.vmem [resolvable:$true] %s27
      %33 = dma.hbm_to_vmem [thread:$0]  %s1, 768, %s28, [#allocation6], 192, 192, 12
    $region9: #{tpu_custom_call.1} parent=1 // pred_fallthru
      _
    // Predicated region
    $region10: #{tpu_custom_call.1} parent=1 // pred_check
      _
    $region11: #{tpu_custom_call.1} parent=1 // pred_check_branch
      %35 = sbr.rel (0) target = $region13
    $region12: #{tpu_custom_call.1} parent=1 // pred_region
      %36 = dma.done [#allocation3], 128
    $region13: #{tpu_custom_call.1} parent=1 // pred_fallthru
      _
    // Predicated region
    $region14: #{tpu_custom_call.1} parent=1 // pred_check
      _
    $region15: #{tpu_custom_call.1} parent=1 // pred_check_branch
      %38 = sbr.rel (0) target = $region17
    $region16: #{tpu_custom_call.1} parent=1 // pred_region
      %39 = dma.done [#allocation6], 768
    $region17: #{tpu_custom_call.1} parent=1 // pred_fallthru
      _
    %v41 = vld [vmem:[#allocation2] sm:$0xf]
    %v42 = vld [vmem:[#allocation2 + $0x4] sm:$0xf]
    %v43 = vld [vmem:[#allocation5] sm:$0xff]
    %v44 = vld [vmem:[#allocation5 + $0x8] sm:$0xf]
    %v45 = vld [vmem:[#allocation5 + $0xc] sm:$0xff]
    %v46 = vld [vmem:[#allocation5 + $0x14] sm:$0xf]
    %v47 = vld [vmem:[#allocation5 + $0x18] sm:$0xff]
    %v48 = vld [vmem:[#allocation5 + $0x20] sm:$0xf]
    %v49 = vld [vmem:[#allocation5 + $0x24] sm:$0xff]
    %v50 = vld [vmem:[#allocation5 + $0x2c] sm:$0xf]
    %v53 = vunpack.c.l.b16 %v41
    %v54 = vunpack.c.l.b16 %v42
    %v55 = vpack.c.b16 %v54, %v53
    %v64 = vunpack.c.l.b16 %v43
    %v65 = vunpack.c.h.b16 %v43
    %v66 = vunpack.c.l.b16 %v44
    %v67 = vunpack.c.l.b16 %v45
    %v68 = vunpack.c.h.b16 %v45
    %v69 = vunpack.c.l.b16 %v46
    %v70 = vunpack.c.l.b16 %v47
    %v71 = vunpack.c.h.b16 %v47
    %v72 = vunpack.c.l.b16 %v48
    %v73 = vunpack.c.l.b16 %v49
    %v74 = vunpack.c.h.b16 %v49
    %v75 = vunpack.c.l.b16 %v50
    %v76 = vpack.c.b16 %v67, %v64
    %v77 = vpack.c.b16 %v68, %v65
    %v78 = vpack.c.b16 %v69, %v66
    %v79 = vpack.c.b16 %v73, %v70
    %v80 = vpack.c.b16 %v74, %v71
    %v81 = vpack.c.b16 %v75, %v72
    %vm88 = vcmask 261120
    %v90 = vsel %vm88, %v55, 0
    %92 = vmatprep.subr.bf16.mxu0 0
    %93 = vmatpush1.bf16.msra.mxu0 0
    %94 = vmatprep.subr.bf16.mxu0 0
    %95 = vmatpush1.bf16.msra.mxu0 0
    %96 = vmatprep.subr.bf16.mxu0 0
    %97 = vmatpush1.bf16.msra.mxu0 0
    %98 = vmatprep.subr.bf16.mxu0 0
    %99 = vmatpush1.bf16.msra.mxu0 0
    %100 = vmatprep.subr.bf16.mxu0 0
    %101 = vmatpush1.bf16.msra.mxu0 0
    %102 = vmatprep.subr.bf16.mxu0 0
    %103 = vmatpush1.bf16.msra.mxu0 0
    %104 = vmatprep.subr.bf16.mxu0 %v80
    %105 = vmatpush1.bf16.msra.mxu0 %v79
    %106 = vmatprep.subr.bf16.mxu0 %v77
    %107 = vmatpush1.bf16.msra.mxu0 %v76
    %108 = vmatprep.subr.bf16.mxu0 0
    %109 = vmatpush2.bf16.msra.mxu0 0
    %110 = vmatprep.subr.bf16.mxu0 0
    %111 = vmatpush2.bf16.msra.mxu0 0
    %112 = vmatprep.subr.bf16.mxu0 0
    %113 = vmatpush2.bf16.msra.mxu0 0
    %114 = vmatprep.subr.bf16.mxu0 0
    %115 = vmatpush2.bf16.msra.mxu0 0
    %116 = vmatprep.subr.bf16.mxu0 0
    %117 = vmatpush2.bf16.msra.mxu0 0
    %118 = vmatprep.subr.bf16.mxu0 0
    %119 = vmatpush2.bf16.msra.mxu0 0
    %120 = vmatprep.subr.bf16.mxu0 0
    %121 = vmatpush2.bf16.msra.mxu0 0
    %122 = vmatprep.subr.bf16.mxu0 0
    %123 = vmatpush2.bf16.msra.mxu0 0
    %124 = vmatprep.mubr.bf16.mxu0 0
    %125 = vmatmul.mubr.bf16.gmra.mxu0 %v90
    %v126 = vpop.f32.mrf.mxu0
    %v127 = vadd.f32 0.0, %v126
    %v128 = vpop.f32.mrf.mxu0
    %v129 = vadd.f32 0.0, %v128
    %v130 = vpop.f32.mrf.mxu0
    %v131 = vadd.f32 0.0, %v130
    %v132 = vpop.f32.mrf.mxu0
    %v133 = vadd.f32 0.0, %v132
    %134 = vdwg.mxu0
    %135 = vmatprep.subr.bf16.mxu0 0
    %136 = vmatpush1.bf16.msra.mxu0 0
    %137 = vmatprep.subr.bf16.mxu0 0
    %138 = vmatpush1.bf16.msra.mxu0 0
    %139 = vmatprep.subr.bf16.mxu0 0
    %140 = vmatpush1.bf16.msra.mxu0 0
    %141 = vmatprep.subr.bf16.mxu0 0
    %142 = vmatpush1.bf16.msra.mxu0 0
    %143 = vmatprep.subr.bf16.mxu0 0
    %144 = vmatpush1.bf16.msra.mxu0 0
    %145 = vmatprep.subr.bf16.mxu0 0
    %146 = vmatpush1.bf16.msra.mxu0 0
    %147 = vmatprep.subr.bf16.mxu0 0
    %148 = vmatpush1.bf16.msra.mxu0 %v81
    %149 = vmatprep.subr.bf16.mxu0 0
    %150 = vmatpush1.bf16.msra.mxu0 %v78
    %151 = vmatprep.subr.bf16.mxu0 0
    %152 = vmatpush2.bf16.msra.mxu0 0
    %153 = vmatprep.subr.bf16.mxu0 0
    %154 = vmatpush2.bf16.msra.mxu0 0
    %155 = vmatprep.subr.bf16.mxu0 0
    %156 = vmatpush2.bf16.msra.mxu0 0
    %157 = vmatprep.subr.bf16.mxu0 0
    %158 = vmatpush2.bf16.msra.mxu0 0
    %159 = vmatprep.subr.bf16.mxu0 0
    %160 = vmatpush2.bf16.msra.mxu0 0
    %161 = vmatprep.subr.bf16.mxu0 0
    %162 = vmatpush2.bf16.msra.mxu0 0
    %163 = vmatprep.subr.bf16.mxu0 0
    %164 = vmatpush2.bf16.msra.mxu0 0
    %165 = vmatprep.subr.bf16.mxu0 0
    %166 = vmatpush2.bf16.msra.mxu0 0
    %167 = vmatprep.mubr.bf16.mxu0 0
    %168 = vmatmul.mubr.bf16.gmra.mxu0 %v90
    %v169 = vpop.f32.mrf.mxu0
    %v170 = vadd.f32 0.0, %v169
    %v171 = vpop.f32.mrf.mxu0
    %v172 = vpop.f32.mrf.mxu0
    %v173 = vadd.f32 0.0, %v172
    %v174 = vpop.f32.mrf.mxu0
    %175 = vdwg.mxu0
    %v176 = vpack.c.bf16 %v131, %v127
    %v177 = vpack.c.bf16 %v133, %v129
    %v178 = vpack.c.bf16 %v173, %v170
    %v182 = vunpack.c.l.b16 %v176
    %v183 = vunpack.c.l.b16 %v177
    %v184 = vunpack.c.l.b16 %v178
    %v185 = vunpack.c.h.b16 %v176
    %v186 = vunpack.c.h.b16 %v177
    %v187 = vunpack.c.h.b16 %v178
    %v188 = vpack.c.b16 %v183, %v182
    %v189 = vpack.c.b16 %v184, %v184
    %v190 = vpack.c.b16 %v186, %v185
    %v191 = vpack.c.b16 %v187, %v187
    %196 = vst [vmem:[#allocation7] sm:$0xff] %v188
    %197 = vst [vmem:[#allocation7 + $0x8] sm:$0xf] %v189
    %198 = vst [vmem:[#allocation7 + $0xc] sm:$0xff] %v190
    %199 = vst [vmem:[#allocation7 + $0x14] sm:$0xf] %v191
    // Predicated region
    $region18: #{tpu_custom_call.1} parent=1 // pred_check
      _
    $region19: #{tpu_custom_call.1} parent=1 // pred_check_branch
      %201 = sbr.rel (0) target = $region21
    $region20: #{tpu_custom_call.1} parent=1 // pred_region
      %s203 = ssub.s32 384, 384
      %204 = vsyncadd [#allocation4], %s203
      %s205 = sshll.u32 [#allocation7], 4
      %s206 = int_to_ptr.vmem [resolvable:$true] %s205
      %211 = dma.vmem_to_hbm [thread:$0]  %s206, 384, %s2, [#allocation4], 192, 192, 12
    $region21: #{tpu_custom_call.1} parent=1 // pred_fallthru
      _
    // Predicated region
    $region22: #{tpu_custom_call.1} parent=1 // pred_check
      _
    $region23: #{tpu_custom_call.1} parent=1 // pred_check_branch
      %213 = sbr.rel (0) target = $region25
    $region24: #{tpu_custom_call.1} parent=1 // pred_region
      %214 = dma.done [#allocation4], 384
    $region25: #{tpu_custom_call.1} parent=1 // pred_fallthru
      _
    %215 = vsyncpa [#allocation3], 1
    %216 = vsyncpa [#allocation6], 1
    %217 = vsyncpa [#allocation4], 1

</llo_original>
